<compile_context>
chip_gen: v7x
topology: tpu7x:2x2x1
jax: 0.10.0
libtpu: 0.0.40
codegen_flags: <defaults>
</compile_context>

<pallas_src>
import functools

import jax
import jax.numpy as jnp
from jax.experimental import pallas as pl
from jax.experimental.pallas import tpu as pltpu

LANES = 128                      # vreg lane width (v5e / v6e / v7x)
MAX_BLOCK_BYTES = 2 * 1024 * 1024  # ~2 MiB per block; 4x block bytes of VMEM in flight


def _round_up(x: int, m: int) -> int:
    return ((x + m - 1) // m) * m


def _gaussian_body(x_ref, o_ref, *, mu, neg_half_inv_sigma_sq):
    # sub/mul on VPU, exp on EUP; compute in f32, store in native I/O dtype.
    x = x_ref[...].astype(jnp.float32)
    d = x - mu
    o_ref[...] = jnp.exp((d * d) * neg_half_inv_sigma_sq).astype(o_ref.dtype)


def gaussian_kernel(x, mu: float = 1.0, sigma: float = 1.0):
    """exp(-0.5 * (x - mu)^2 / sigma^2), elementwise, any shape."""
    orig_shape = x.shape
    if not jnp.issubdtype(x.dtype, jnp.floating):
        x = x.astype(jnp.float32)           # integer/bool inputs -> float32 result
    io_dtype = x.dtype
    itemsize = jnp.dtype(io_dtype).itemsize
    # Sublane granule: 8 for 4-byte, 16 for 2-byte, 32 for 1-byte dtypes.
    sublane_mult = max(8, 32 // itemsize)
    n = x.size

    rows_needed = max(pl.cdiv(n, LANES), 1)
    rows_padded = _round_up(rows_needed, sublane_mult)

    # Biggest block that keeps 4x block bytes (in+out, double-buffered) modest.
    max_rows = max(
        _round_up(MAX_BLOCK_BYTES // (LANES * itemsize), sublane_mult), sublane_mult
    )
    # Aim for >= 2 blocks so v7x's two TensorCores both get work.
    rows_per_block = min(max_rows, _round_up(pl.cdiv(rows_padded, 2), sublane_mult))
    rows_per_block = max(min(rows_per_block, rows_padded), sublane_mult)

    flat = jnp.ravel(x)
    pad = rows_padded * LANES - n
    if pad:
        flat = jnp.pad(flat, (0, pad))       # only when packing isn't clean
    x2 = flat.reshape(rows_padded, LANES)

    kernel = functools.partial(
        _gaussian_body,
        mu=float(mu),
        neg_half_inv_sigma_sq=-0.5 / (float(sigma) ** 2),
    )

    grid = (pl.cdiv(rows_padded, rows_per_block),)
    out2 = pl.pallas_call(
        kernel,
        out_shape=jax.ShapeDtypeStruct((rows_padded, LANES), io_dtype),
        grid=grid,
        in_specs=[pl.BlockSpec((rows_per_block, LANES), lambda i: (i, 0))],
        out_specs=pl.BlockSpec((rows_per_block, LANES), lambda i: (i, 0)),
        compiler_params=pltpu.CompilerParams(
            dimension_semantics=("parallel",)),
        cost_estimate=pl.CostEstimate(
            flops=3 * n, transcendentals=n, bytes_accessed=2 * n * itemsize),
    )(x2)

    if pad:
        out = out2.reshape(-1)[:n].reshape(orig_shape)
    else:
        out = out2.reshape(orig_shape)
    return out


def _reference(x, mu=1.0, sigma=1.0):
    xf = x.astype(jnp.float32)
    return jnp.exp(-0.5 * (xf - mu) ** 2 / sigma ** 2)


if __name__ == "__main__":
    key = jax.random.PRNGKey(0)
    k1, k2 = jax.random.split(key)

    # Shape from the module docstring example: torch.randn(4, 5, 10)  (pad path).
    x = jax.random.normal(k1, (4, 5, 10), dtype=jnp.float32)
    y = jax.jit(gaussian_kernel)(x)
    jax.block_until_ready(y)
    assert y.shape == x.shape and y.dtype == x.dtype
    assert jnp.allclose(y, _reference(x), atol=1e-6, rtol=1e-6)

    # Clean-packing bf16 input (no pad / slice path, native-dtype I/O).
    x_bf = jax.random.normal(k2, (8, 256), dtype=jnp.bfloat16)
    y_bf = jax.jit(
        functools.partial(gaussian_kernel, mu=0.5, sigma=2.0))(x_bf)
    jax.block_until_ready(y_bf)
    assert y_bf.shape == x_bf.shape and y_bf.dtype == x_bf.dtype
    assert jnp.allclose(y_bf.astype(jnp.float32),
                        _reference(x_bf, mu=0.5, sigma=2.0),
                        atol=2e-2, rtol=2e-2)

    print("KERNEL_OK")
</pallas_src>

<mosaic_0001>
module attributes {stable_mosaic.version = 11 : i64} {
  func.func @_gaussian_body(%arg0: i32, %arg1: memref<8x128xf32, #tpu.memory_space<vmem>>, %arg2: memref<8x128xf32, #tpu.memory_space<vmem>>) attributes {dimension_semantics = [#tpu.dimension_semantics<parallel>], iteration_bounds = array<i64: 1>, scalar_prefetch = 0 : i64, scratch_operands = 0 : i64, tpu.core_type = #tpu.core_type<tc>, window_params = [{transform_indices = @transform_0, window_bounds = array<i64: 8, 128>}, {transform_indices = @transform_1, window_bounds = array<i64: 8, 128>}]} {
    %c0 = arith.constant 0 : index
    %c0_0 = arith.constant 0 : index
    %0 = vector.load %arg1[%c0, %c0_0] : memref<8x128xf32, #tpu.memory_space<vmem>>, vector<8x128xf32>
    %cst = arith.constant 1.000000e+00 : f32
    %1 = vector.broadcast %cst : f32 to vector<8x128xf32>
    %2 = arith.subf %0, %1 : vector<8x128xf32>
    %3 = arith.mulf %2, %2 : vector<8x128xf32>
    %cst_1 = arith.constant -5.000000e-01 : f32
    %4 = vector.broadcast %cst_1 : f32 to vector<8x128xf32>
    %5 = arith.mulf %3, %4 : vector<8x128xf32>
    %6 = math.exp %5 : vector<8x128xf32>
    %c0_2 = arith.constant 0 : index
    %c0_3 = arith.constant 0 : index
    %7 = vector.load %arg2[%c0_2, %c0_3] : memref<8x128xf32, #tpu.memory_space<vmem>>, vector<8x128xf32>
    tpu.vector_store %arg2[%c0_2, %c0_3], %6 {strides = array<i32>} : memref<8x128xf32, #tpu.memory_space<vmem>>, vector<8x128xf32>,
    return
  }
  func.func @transform_0(%arg0: i32) -> (i32, i32) {
    %c0_i32 = arith.constant 0 : i32
    %c0_i32_0 = arith.constant 0 : i32
    return %arg0, %c0_i32 : i32, i32
  }
  func.func @transform_1(%arg0: i32) -> (i32, i32) {
    %c0_i32 = arith.constant 0 : i32
    %c0_i32_0 = arith.constant 0 : i32
    return %arg0, %c0_i32 : i32, i32
  }
}

</mosaic_0001>

<llo_original>
// kernel: gaussian_kernel.1
$region0: #{gaussian_kernel.1}
  #allocation0 [shape = 'u32[]', space=smem, size = 0x4, offset = 0x4, fixed_abs, tag = 'smem constant byte address 0x4 - core index']
  #allocation1 [shape = 'u32[144,128]{1,0:T(1,128)}', space=vmem, size = 0x12000, scoped, tag = 'internal scratch']
  %s0 = inlined_call_operand.vmem [shape: f32[8,128], index: 0, kind: input, shape index: {}]
  %s1 = inlined_call_operand.vmem [shape: f32[8,128], index: 1, kind: output, shape index: {}]
  %s2 = sld [smem:[#allocation0]]
  $region14: #{gaussian_kernel.1} parent=0
    _
  %s4 = ssub.s32 1, %s2
  %s5 = scalar_select 0, %s4, %s2
  // Predicated region
  $region2: #{gaussian_kernel.1} parent=0 // pred_check
    _
  $region3: #{gaussian_kernel.1} parent=0 // pred_check_branch
    %7 = sbr.rel (0) target = $region5
  $region4: #{gaussian_kernel.1} parent=0 // pred_region
    _
  $region5: #{gaussian_kernel.1} parent=0 // pred_fallthru
    _
  %v8 = vld [vmem:[%s0] sm:$0xff]
  %v9 = vsub.f32 %v8, 1.0
  %v10 = vmul.f32 %v9, %v9
  %v11 = vmul.f32 %v10, -0.5
  %v12 = vmul.f32 %v11, 1.442695
  %v13 = vpow.pop %v12
  %14 = vst [vmem:[%s1] sm:$0xff] %v13
  // Predicated region
  $region6: #{gaussian_kernel.1} parent=0 // pred_check
    _
  $region7: #{gaussian_kernel.1} parent=0 // pred_check_branch
    %16 = sbr.rel (0) target = $region9
  $region8: #{gaussian_kernel.1} parent=0 // pred_region
    _
  $region9: #{gaussian_kernel.1} parent=0 // pred_fallthru
    _
  // Predicated region
  $region10: #{gaussian_kernel.1} parent=0 // pred_check
    _
  $region11: #{gaussian_kernel.1} parent=0 // pred_check_branch
    %18 = sbr.rel (0) target = $region13
  $region12: #{gaussian_kernel.1} parent=0 // pred_region
    _
  $region13: #{gaussian_kernel.1} parent=0 // pred_fallthru
    _

</llo_original>
